<compile_context>
chip_gen: v7x
topology: tpu7x:2x2x1
jax: 0.10.0
libtpu: 0.0.40
codegen_flags: <defaults>
</compile_context>

<pallas_src>
import jax
import jax.numpy as jnp
from jax.experimental import pallas as pl
from jax.experimental.pallas import tpu as pltpu

BN_EPS = 1e-5
LANES = 128                     # lane width: M tiles / K padding quantum
TK_MAX = 1024                   # max K-tile depth (multiple of 256 for v6e/v7x MXU)
VMEM_LIMIT = 32 * 1024 * 1024   # explicit scoped-VMEM budget (safe on v5e/v6e/v7x)


def _round_up(x, m):
    return ((x + m - 1) // m) * m


# --------------------------------------------------------------------------- #
# Kernels
# --------------------------------------------------------------------------- #
def _matmul_stats_kernel(w_ref, p_ref, conv_ref, stats_ref, acc_ref):
    """Phase 1: conv_t tile = W @ P_T (bf16 in, f32 MXU acc) + channel sum/sumsq.

    w_ref:     (C_pad, TK)      bf16   weight slab for this K step
    p_ref:     (TK, M_TILE)     bf16   transposed patch tile (streamed)
    conv_ref:  (C_pad, M_TILE)  bf16   conv tile (written at last K step)
    stats_ref: (1, C_pad, 2)    f32    [..., 0] = sum, [..., 1] = sum of squares
    acc_ref:   (C_pad, M_TILE)  f32    VMEM accumulator scratch
    """
    k = pl.program_id(1)

    @pl.when(k == 0)
    def _():
        acc_ref[...] = jnp.zeros_like(acc_ref)

    acc_ref[...] += jnp.dot(w_ref[...], p_ref[...],
                            preferred_element_type=jnp.float32)

    @pl.when(k == pl.num_programs(1) - 1)
    def _():
        acc = acc_ref[...]
        conv_ref[...] = acc.astype(conv_ref.dtype)
        s = jnp.sum(acc, axis=1, keepdims=True)          # (C_pad, 1)
        ss = jnp.sum(acc * acc, axis=1, keepdims=True)   # (C_pad, 1)
        col = jax.lax.broadcasted_iota(jnp.int32, (acc.shape[0], 2), 1)
        stats_ref[...] = jnp.where(col == 0, s, ss)[None]   # (1, C_pad, 2)


def _bn_relu_kernel(conv_ref, ss_ref, o_ref):
    """Phase 2: y = relu(conv * scale + shift); M (lane axis) fully dense."""
    scale = ss_ref[0]    # (C_pad, 1) f32, broadcast across lanes
    shift = ss_ref[1]
    y = conv_ref[...].astype(jnp.float32) * scale + shift
    o_ref[...] = jnp.maximum(y, 0.0)


# --------------------------------------------------------------------------- #
# im2col (in XLA, directly in transposed (K, M) layout -- see TODO above)
# --------------------------------------------------------------------------- #
def _im2col_3d_t(x, kernel, stride, padding):
    """x: (N, C, D, H, W) -> P_T (C*kd*kh*kw, N*OD*OH*OW), plus (OD, OH, OW)."""
    N, C, D, H, W = x.shape
    kd, kh, kw = kernel
    sd, sh, sw = stride
    xp = jnp.pad(x, ((0, 0), (0, 0),
                     (padding, padding), (padding, padding), (padding, padding)))
    Dp, Hp, Wp = D + 2 * padding, H + 2 * padding, W + 2 * padding
    OD = (Dp - kd) // sd + 1
    OH = (Hp - kh) // sh + 1
    OW = (Wp - kw) // sw + 1

    cols = []
    for dz in range(kd):
        for dy in range(kh):
            for dx in range(kw):
                cols.append(
                    xp[:, :, dz:dz + sd * OD:sd, dy:dy + sh * OH:sh, dx:dx + sw * OW:sw]
                )  # each (N, C, OD, OH, OW)
    cols = jnp.stack(cols, axis=2)                       # (N, C, taps, OD, OH, OW)
    p_t = jnp.transpose(cols, (1, 2, 0, 3, 4, 5)).reshape(
        C * kd * kh * kw, N * OD * OH * OW)              # K order matches weight.reshape
    return p_t, (OD, OH, OW)


# --------------------------------------------------------------------------- #
# Tile selection
# --------------------------------------------------------------------------- #
def _choose_tiles(M, K):
    """Pick (m_tile, tk, K_pad): ~4 MiB of bf16 patch bytes per grid step,
    K bounded at TK_MAX, and >= 2 M-tiles so both v7x TensorCores get work."""
    K_pad = _round_up(K, LANES)
    if K_pad > TK_MAX:
        tk = TK_MAX
        K_pad = _round_up(K, TK_MAX)
    else:
        tk = K_pad
    m_tile = max(128, min(4096, (4 * 1024 * 1024) // (2 * tk)))
    m_tile = (m_tile // 128) * 128
    while m_tile > 128 and pl.cdiv(M, m_tile) < 2:
        m_tile = max(128, ((m_tile // 2) // 128) * 128)
    return m_tile, tk, K_pad


# --------------------------------------------------------------------------- #
# Wrapper
# --------------------------------------------------------------------------- #
def conv3d_bn_relu(x, weight, bias, gamma, beta, *, stride=1, padding=0):
    """Equivalent of Conv3d_BN.forward (bn=True, train-mode BN, ReLU).

    x:      (N, C_in, D, H, W)      float32
    weight: (C_out, C_in, kd, kh, kw)
    bias/gamma/beta: (C_out,)
    returns (N, C_out, OD, OH, OW)  float32
    """
    if isinstance(stride, int):
        stride = (stride, stride, stride)
    C_out, C_in, kd, kh, kw = weight.shape
    N = x.shape[0]
    K = C_in * kd * kh * kw

    p_t, (OD, OH, OW) = _im2col_3d_t(x, (kd, kh, kw), stride, padding)
    M = p_t.shape[1]

    m_tile, tk, K_pad = _choose_tiles(M, K)
    C_pad = _round_up(max(C_out, 16), 16)      # sublane axis; NOT padded to 128
    M_pad = _round_up(M, m_tile)
    num_m = M_pad // m_tile
    num_k = K_pad // tk

    # Padded K rows / M columns are zero -> contribute nothing to conv or stats.
    p_pad = jnp.pad(p_t, ((0, K_pad - K), (0, M_pad - M))).astype(jnp.bfloat16)
    w_mat = jnp.pad(weight.reshape(C_out, K),
                    ((0, C_pad - C_out), (0, K_pad - K))).astype(jnp.bfloat16)

    # Conv bias is exactly cancelled by train-mode BN; drop it.
    del bias
    gamma_p = jnp.pad(gamma.astype(jnp.float32), (0, C_pad - C_out))
    beta_p = jnp.pad(beta.astype(jnp.float32), (0, C_pad - C_out))

    # ---- phase 1: K-tiled matmul + per-M-tile channel stats ------------------
    cost1 = pl.CostEstimate(
        flops=int(2 * M_pad * K_pad * C_pad),
        transcendentals=0,
        bytes_accessed=int(2 * K_pad * M_pad + 2 * K_pad * C_pad * num_m
                           + 2 * C_pad * M_pad + 4 * num_m * C_pad * 2),
    )
    conv_t, part_stats = pl.pallas_call(
        _matmul_stats_kernel,
        out_shape=(
            jax.ShapeDtypeStruct((C_pad, M_pad), jnp.bfloat16),
            jax.ShapeDtypeStruct((num_m, C_pad, 2), jnp.float32),
        ),
        grid_spec=pltpu.PrefetchScalarGridSpec(
            num_scalar_prefetch=0,
            grid=(num_m, num_k),
            in_specs=[
                pl.BlockSpec((C_pad, tk), lambda i, k: (0, k)),
                pl.BlockSpec((tk, m_tile), lambda i, k: (k, i)),
            ],
            out_specs=(
                pl.BlockSpec((C_pad, m_tile), lambda i, k: (0, i)),
                pl.BlockSpec((1, C_pad, 2), lambda i, k: (i, 0, 0)),
            ),
            scratch_shapes=[pltpu.VMEM((C_pad, m_tile), jnp.float32)],
        ),
        compiler_params=pltpu.CompilerParams(
            dimension_semantics=("parallel", "arbitrary"),
            vmem_limit_bytes=VMEM_LIMIT),
        cost_estimate=cost1,
    )(w_mat, p_pad)

    # ---- per-channel scale / shift (tiny (C,) math in plain JAX) -------------
    sums = jnp.sum(part_stats[:, :, 0], axis=0)          # (C_pad,)
    sumsq = jnp.sum(part_stats[:, :, 1], axis=0)         # (C_pad,)
    inv_m = 1.0 / float(M)                               # true M, not M_pad
    mean = sums * inv_m
    # E[x^2] - mean^2 clamped at 0.
    # TODO(synk): switch to a shifted / Welford accumulation if BN stats must
    # match PyTorch bit-closely for activations with |mean| >> std.
    var = jnp.maximum(sumsq * inv_m - mean * mean, 0.0)
    scale = gamma_p * jax.lax.rsqrt(var + BN_EPS)
    shift = beta_p - mean * scale
    ss = jnp.stack([scale, shift], axis=0).reshape(2, C_pad, 1)

    # ---- phase 2: normalize + ReLU (bf16 in, f32 out, lane-dense M) ----------
    cost2 = pl.CostEstimate(
        flops=int(3 * C_pad * M_pad),
        transcendentals=0,
        bytes_accessed=int(2 * C_pad * M_pad + 4 * C_pad * M_pad + 4 * 2 * C_pad),
    )
    out_t = pl.pallas_call(
        _bn_relu_kernel,
        out_shape=jax.ShapeDtypeStruct((C_pad, M_pad), jnp.float32),
        grid_spec=pltpu.PrefetchScalarGridSpec(
            num_scalar_prefetch=0,
            grid=(num_m,),
            in_specs=[
                pl.BlockSpec((C_pad, m_tile), lambda i: (0, i)),
                pl.BlockSpec((2, C_pad, 1), lambda i: (0, 0, 0)),
            ],
            out_specs=pl.BlockSpec((C_pad, m_tile), lambda i: (0, i)),
        ),
        compiler_params=pltpu.CompilerParams(
            dimension_semantics=("parallel",),
            vmem_limit_bytes=VMEM_LIMIT),
        cost_estimate=cost2,
    )(conv_t, ss)

    # (C, M) -> (C, N, OD, OH, OW) -> NCDHW (cheap leading-axis permute).
    # TODO(synk): this last permute could be dropped if the consumer accepts
    # channel-major / NDHWC output.
    out = out_t[:C_out, :M].reshape(C_out, N, OD, OH, OW)
    return jnp.transpose(out, (1, 0, 2, 3, 4))


# --------------------------------------------------------------------------- #
# Pure-JAX reference (train-mode BN), for self-check
# --------------------------------------------------------------------------- #
def _reference(x, weight, bias, gamma, beta, stride, padding):
    dn = jax.lax.conv_dimension_numbers(x.shape, weight.shape,
                                        ("NCDHW", "OIDHW", "NCDHW"))
    conv = jax.lax.conv_general_dilated(
        x, weight, window_strides=stride,
        padding=[(padding, padding)] * 3,
        dimension_numbers=dn) + bias.reshape(1, -1, 1, 1, 1)
    mean = jnp.mean(conv, axis=(0, 2, 3, 4), keepdims=True)
    var = jnp.mean((conv - mean) ** 2, axis=(0, 2, 3, 4), keepdims=True)
    y = (conv - mean) * jax.lax.rsqrt(var + BN_EPS)
    y = y * gamma.reshape(1, -1, 1, 1, 1) + beta.reshape(1, -1, 1, 1, 1)
    return jnp.maximum(y, 0.0)


# --------------------------------------------------------------------------- #
# Example / smoke test
# --------------------------------------------------------------------------- #
if __name__ == "__main__":
    # Conv3d_BN(in_channels=4, out_channels=8, kernel=(3,3,3), stride=1, padding=1)
    key = jax.random.PRNGKey(0)
    k_x, k_w, k_b, k_g, k_be = jax.random.split(key, 5)

    N, C_in, D, H, W = 2, 4, 8, 8, 8
    C_out = 8
    kernel = (3, 3, 3)

    x = jax.random.normal(k_x, (N, C_in, D, H, W), dtype=jnp.float32)
    weight = jax.random.normal(k_w, (C_out, C_in) + kernel, dtype=jnp.float32) * 0.1
    bias = jax.random.normal(k_b, (C_out,), dtype=jnp.float32) * 0.1
    gamma = 1.0 + 0.1 * jax.random.normal(k_g, (C_out,), dtype=jnp.float32)
    beta = 0.1 * jax.random.normal(k_be, (C_out,), dtype=jnp.float32)

    fwd = jax.jit(lambda x_, w_, b_, g_, be_: conv3d_bn_relu(
        x_, w_, b_, g_, be_, stride=1, padding=1))
    out = jax.block_until_ready(fwd(x, weight, bias, gamma, beta))

    assert out.shape == (N, C_out, D, H, W), out.shape
    assert bool(jnp.all(jnp.isfinite(out)))

    ref = _reference(x, weight, bias, gamma, beta, (1, 1, 1), 1)
    err = float(jnp.max(jnp.abs(out - ref)))
    assert err < 0.1, f"max |err| = {err}"   # bf16 matmul / bf16 intermediate tolerance

    print("KERNEL_OK")
</pallas_src>

<mosaic_0001>
module attributes {stable_mosaic.version = 11 : i64} {
  func.func @_matmul_stats_kernel(%arg0: i32, %arg1: i32, %arg2: memref<16x128xbf16, #tpu.memory_space<vmem>>, %arg3: memref<128x512xbf16, #tpu.memory_space<vmem>>, %arg4: memref<16x512xbf16, #tpu.memory_space<vmem>>, %arg5: memref<1x16x2xf32, #tpu.memory_space<vmem>>, %arg6: memref<16x512xf32, #tpu.memory_space<vmem>>) attributes {dimension_semantics = [#tpu.dimension_semantics<parallel>, #tpu.dimension_semantics<arbitrary>], iteration_bounds = array<i64: 2, 1>, scalar_prefetch = 0 : i64, scratch_operands = 1 : i64, tpu.core_type = #tpu.core_type<tc>, window_params = [{transform_indices = @transform_0, window_bounds = array<i64: 16, 128>}, {transform_indices = @transform_1, window_bounds = array<i64: 128, 512>}, {transform_indices = @transform_2, window_bounds = array<i64: 16, 512>}, {transform_indices = @transform_3, window_bounds = array<i64: 1, 16, 2>}]} {
    %c0_i32 = arith.constant 0 : i32
    %0 = arith.cmpi eq, %arg1, %c0_i32 : i32
    %1 = arith.extui %0 : i1 to i32
    %c0_i32_0 = arith.constant 0 : i32
    %2 = arith.cmpi ne, %1, %c0_i32_0 : i32
    scf.if %2 {
      %cst_10 = arith.constant 0.000000e+00 : f32
      %12 = vector.broadcast %cst_10 : f32 to vector<16x512xf32>
      %c0_11 = arith.constant 0 : index
      %c0_12 = arith.constant 0 : index
      %13 = vector.load %arg6[%c0_11, %c0_12] : memref<16x512xf32, #tpu.memory_space<vmem>>, vector<16x512xf32>
      tpu.vector_store %arg6[%c0_11, %c0_12], %12 {strides = array<i32>} : memref<16x512xf32, #tpu.memory_space<vmem>>, vector<16x512xf32>,
    } else {
    }
    %c0 = arith.constant 0 : index
    %c0_1 = arith.constant 0 : index
    %3 = vector.load %arg6[%c0, %c0_1] : memref<16x512xf32, #tpu.memory_space<vmem>>, vector<16x512xf32>
    %c0_2 = arith.constant 0 : index
    %c0_3 = arith.constant 0 : index
    %4 = vector.load %arg2[%c0_2, %c0_3] : memref<16x128xbf16, #tpu.memory_space<vmem>>, vector<16x128xbf16>
    %c0_4 = arith.constant 0 : index
    %c0_5 = arith.constant 0 : index
    %5 = vector.load %arg3[%c0_4, %c0_5] : memref<128x512xbf16, #tpu.memory_space<vmem>>, vector<128x512xbf16>
    %cst = arith.constant dense<0.000000e+00> : vector<16x512xf32>
    %6 = tpu.matmul %4, %5, %cst {dimension_numbers = #tpu.dot_dimension_numbers<[1], [0], [0], [1], [0, 0, 1, 1], [], []>} : vector<16x128xbf16>, vector<128x512xbf16>, vector<16x512xf32> -> vector<16x512xf32>
    %7 = arith.addf %3, %6 : vector<16x512xf32>
    %c0_6 = arith.constant 0 : index
    %c0_7 = arith.constant 0 : index
    %8 = vector.load %arg6[%c0_6, %c0_7] : memref<16x512xf32, #tpu.memory_space<vmem>>, vector<16x512xf32>
    tpu.vector_store %arg6[%c0_6, %c0_7], %7 {strides = array<i32>} : memref<16x512xf32, #tpu.memory_space<vmem>>, vector<16x512xf32>,
    %c0_i32_8 = arith.constant 0 : i32
    %9 = arith.cmpi eq, %arg1, %c0_i32_8 : i32
    %10 = arith.extui %9 : i1 to i32
    %c0_i32_9 = arith.constant 0 : i32
    %11 = arith.cmpi ne, %10, %c0_i32_9 : i32
    scf.if %11 {
      %c0_10 = arith.constant 0 : index
      %c0_11 = arith.constant 0 : index
      %12 = vector.load %arg6[%c0_10, %c0_11] : memref<16x512xf32, #tpu.memory_space<vmem>>, vector<16x512xf32>
      %13 = arith.truncf %12 : vector<16x512xf32> to vector<16x512xbf16>
      %c0_12 = arith.constant 0 : index
      %c0_13 = arith.constant 0 : index
      %14 = vector.load %arg4[%c0_12, %c0_13] : memref<16x512xbf16, #tpu.memory_space<vmem>>, vector<16x512xbf16>
      tpu.vector_store %arg4[%c0_12, %c0_13], %13 {strides = array<i32>} : memref<16x512xbf16, #tpu.memory_space<vmem>>, vector<16x512xbf16>,
      %cst_14 = arith.constant dense<0.000000e+00> : vector<16xf32>
      %15 = vector.multi_reduction <add>, %12, %cst_14 [1] : vector<16x512xf32> to vector<16xf32>
      %16 = vector.shape_cast %15 : vector<16xf32> to vector<16x1xf32>
      %17 = arith.mulf %12, %12 : vector<16x512xf32>
      %cst_15 = arith.constant dense<0.000000e+00> : vector<16xf32>
      %18 = vector.multi_reduction <add>, %17, %cst_15 [1] : vector<16x512xf32> to vector<16xf32>
      %19 = vector.shape_cast %18 : vector<16xf32> to vector<16x1xf32>
      %20 = tpu.iota {dimensions = array<i32: 1>} : vector<16x2xi32>
      %c0_i32_16 = arith.constant 0 : i32
      %21 = vector.broadcast %c0_i32_16 : i32 to vector<16x2xi32>
      %22 = arith.cmpi eq, %20, %21 : vector<16x2xi32>
      %23 = vector.shape_cast %16 : vector<16x1xf32> to vector<16x1xf32>
      %24 = vector.broadcast %23 : vector<16x1xf32> to vector<16x2xf32>
      %25 = vector.shape_cast %19 : vector<16x1xf32> to vector<16x1xf32>
      %26 = vector.broadcast %25 : vector<16x1xf32> to vector<16x2xf32>
      %27 = arith.select %22, %24, %26 : vector<16x2xi1>, vector<16x2xf32>
      %28 = vector.shape_cast %27 : vector<16x2xf32> to vector<1x16x2xf32>
      %c0_17 = arith.constant 0 : index
      %c0_18 = arith.constant 0 : index
      %c0_19 = arith.constant 0 : index
      %29 = vector.load %arg5[%c0_17, %c0_18, %c0_19] : memref<1x16x2xf32, #tpu.memory_space<vmem>>, vector<1x16x2xf32>
      tpu.vector_store %arg5[%c0_17, %c0_18, %c0_19], %28 {strides = array<i32>} : memref<1x16x2xf32, #tpu.memory_space<vmem>>, vector<1x16x2xf32>,
    } else {
    }
    return
  }
  func.func @transform_0(%arg0: i32, %arg1: i32) -> (i32, i32) {
    %c0_i32 = arith.constant 0 : i32
    %c0_i32_0 = arith.constant 0 : i32
    return %c0_i32, %arg1 : i32, i32
  }
  func.func @transform_1(%arg0: i32, %arg1: i32) -> (i32, i32) {
    %c0_i32 = arith.constant 0 : i32
    return %arg1, %arg0 : i32, i32
  }
  func.func @transform_2(%arg0: i32, %arg1: i32) -> (i32, i32) {
    %c0_i32 = arith.constant 0 : i32
    %c0_i32_0 = arith.constant 0 : i32
    return %c0_i32, %arg0 : i32, i32
  }
  func.func @transform_3(%arg0: i32, %arg1: i32) -> (i32, i32, i32) {
    %c0_i32 = arith.constant 0 : i32
    %c0_i32_0 = arith.constant 0 : i32
    %c0_i32_1 = arith.constant 0 : i32
    return %arg0, %c0_i32, %c0_i32_0 : i32, i32, i32
  }
}

module attributes {stable_mosaic.version = 11 : i64} {
  func.func @_bn_relu_kernel(%arg0: i32, %arg1: memref<16x512xbf16, #tpu.memory_space<vmem>>, %arg2: memref<2x16x1xf32, #tpu.memory_space<vmem>>, %arg3: memref<16x512xf32, #tpu.memory_space<vmem>>) attributes {dimension_semantics = [#tpu.dimension_semantics<parallel>], iteration_bounds = array<i64: 2>, scalar_prefetch = 0 : i64, scratch_operands = 0 : i64, tpu.core_type = #tpu.core_type<tc>, window_params = [{transform_indices = @transform_0, window_bounds = array<i64: 16, 512>}, {pipeline_mode = #tpu.pipeline_mode<synchronous>, transform_indices = @transform_1, window_bounds = array<i64: 2, 16, 1>}, {transform_indices = @transform_2, window_bounds = array<i64: 16, 512>}]} {
    %c0 = arith.constant 0 : index
    %c0_0 = arith.constant 0 : index
    %c0_1 = arith.constant 0 : index
    %0 = vector.load %arg2[%c0, %c0_0, %c0_1] : memref<2x16x1xf32, #tpu.memory_space<vmem>>, vector<1x16x1xf32>
    %1 = vector.shape_cast %0 : vector<1x16x1xf32> to vector<16x1xf32>
    %c1 = arith.constant 1 : index
    %c0_2 = arith.constant 0 : index
    %c0_3 = arith.constant 0 : index
    %2 = vector.load %arg2[%c1, %c0_2, %c0_3] : memref<2x16x1xf32, #tpu.memory_space<vmem>>, vector<1x16x1xf32>
    %3 = vector.shape_cast %2 : vector<1x16x1xf32> to vector<16x1xf32>
    %c0_4 = arith.constant 0 : index
    %c0_5 = arith.constant 0 : index
    %4 = vector.load %arg1[%c0_4, %c0_5] : memref<16x512xbf16, #tpu.memory_space<vmem>>, vector<16x512xbf16>
    %5 = arith.extf %4 : vector<16x512xbf16> to vector<16x512xf32>
    %6 = vector.broadcast %1 : vector<16x1xf32> to vector<16x512xf32>
    %7 = arith.mulf %5, %6 : vector<16x512xf32>
    %8 = vector.broadcast %3 : vector<16x1xf32> to vector<16x512xf32>
    %9 = arith.addf %7, %8 : vector<16x512xf32>
    %cst = arith.constant 0.000000e+00 : f32
    %10 = vector.broadcast %cst : f32 to vector<16x512xf32>
    %11 = arith.maximumf %9, %10 : vector<16x512xf32>
    %c0_6 = arith.constant 0 : index
    %c0_7 = arith.constant 0 : index
    %12 = vector.load %arg3[%c0_6, %c0_7] : memref<16x512xf32, #tpu.memory_space<vmem>>, vector<16x512xf32>
    tpu.vector_store %arg3[%c0_6, %c0_7], %11 {strides = array<i32>} : memref<16x512xf32, #tpu.memory_space<vmem>>, vector<16x512xf32>,
    return
  }
  func.func @transform_0(%arg0: i32) -> (i32, i32) {
    %c0_i32 = arith.constant 0 : i32
    %c0_i32_0 = arith.constant 0 : i32
    return %c0_i32, %arg0 : i32, i32
  }
  func.func @transform_1(%arg0: i32) -> (i32, i32, i32) {
    %c0_i32 = arith.constant 0 : i32
    %c0_i32_0 = arith.constant 0 : i32
    %c0_i32_1 = arith.constant 0 : i32
    %c0_i32_2 = arith.constant 0 : i32
    return %c0_i32, %c0_i32_0, %c0_i32_1 : i32, i32, i32
  }
  func.func @transform_2(%arg0: i32) -> (i32, i32) {
    %c0_i32 = arith.constant 0 : i32
    %c0_i32_0 = arith.constant 0 : i32
    return %c0_i32, %arg0 : i32, i32
  }
}

</mosaic_0001>

<llo_original>
// kernel: _lambda_.2
$region0: #{_lambda_.2}
  #allocation0 [shape = 'u32[]', space=smem, size = 0x4, offset = 0x4, fixed_abs, tag = 'smem constant byte address 0x4 - core index']
  #allocation1 [shape = 'u32[144,128]{1,0:T(1,128)}', space=vmem, size = 0x12000, scoped, tag = 'internal scratch']
  #allocation2 [shape = 'f32[16,512]{1,0:T(8,128)}', space=vmem, size = 0x8000, scoped, tag = 'scratch operand']
  %s0 = inlined_call_operand.vmem [shape: bf16[16,128], index: 0, kind: input, shape index: {}]
  %s1 = inlined_call_operand.vmem [shape: bf16[128,1024], index: 1, kind: input, shape index: {}]
  %s2 = inlined_call_operand.vmem [shape: bf16[16,1024], index: 2, kind: output, shape index: {0}]
  %s3 = inlined_call_operand.vmem [shape: f32[2,16,2], index: 3, kind: output, shape index: {1}]
  %4 = xla_tuple %s2, %s3
  %s5 = sld [smem:[#allocation0]]
  $region99: #{_lambda_.2} parent=0
    _
  %s7 = ssub.s32 1, %s5
  %s8 = scalar_select 0, %s7, %s5
  $region1: #{_lambda_.2} parent=0
    #allocation3 [shape = 'u8[262144]{0}', space=vmem, size = 0x40000, scoped, tag = 'input window, operand 1']
    #allocation4 [shape = 'u8[32768]{0}', space=vmem, size = 0x8000, scoped, tag = 'output window, operand 0']
    loop: start=0, step=1, limit=4
    $region2: #{_lambda_.2} parent=1 // loop_pre_header
      _
    $region3: #{_lambda_.2} parent=1 // loop_header
      %s10 = sphi 0, %s14
      %p11 = scmp.ge.s32.totalorder %s10, 4
      %s17 = sphi 0, %s29
      %s18 = sphi 0, %s25
      %s19 = sphi 0, %s17
      %s20 = sphi 0, %s18
      %s21 = sphi 0, %s19
      %s22 = sphi 0, %s20
      %s32 = sphi 0, %s34
      %s35 = sphi 0, %s32
      %s36 = sphi 0, %s35
      %s52 = sphi 0, %s36
      %s60 = sphi 0, %s62
      %s63 = sphi 0, %s60
      %s64 = sphi 0, %s63
      %s80 = sphi 0, %s64
      %s86 = sphi 0, %s88
      %s89 = sphi 0, %s86
      %s90 = sphi 0, %s89
      %s106 = sphi 0, %s90
      %s112 = sphi 0, %s114
      %s115 = sphi 0, %s112
      %s116 = sphi 0, %s115
      %s132 = sphi 0, %s116
    $region4: #{_lambda_.2} parent=1 // loop_header_branch
      %13 = sbr.rel (%p11) target = $region8
    $region5: #{_lambda_.2} parent=1 // loop_body
      %s15 = ssub.s32 %s10, 1
      %s16 = ssub.s32 %s10, 2
      %s23 = sadd.s32 1, %s18
      %p24 = scmp.ge.s32.totalorder %s23, 1
      %s25 = scalar_select %p24, 0, %s23
      %s26 = sadd.s32 1, %s17
      %s27 = scalar_select %p24, %s26, %s17
      %p28 = scmp.ge.s32.totalorder %s27, 2
      %s29 = scalar_select %p28, 0, %s27
      %s30 = ssub.s32 %s18, %s25
      %p31 = scmp.eq.s32.totalorder %s30, 0
      %s33 = sadd.s32 %s32, 1
      %s34 = scalar_select %p31, %s32, %s33
      %p37 = pneg %p31
      %p38 = scmp.eq.s32.totalorder %s10, 1
      %p39 = por %p37, %p38
      %p40 = scmp.ne.s32.totalorder %s32, %s35
      %p41 = scmp.eq.s32.totalorder %s10, 0
      %p42 = por %p40, %p41
      %p43 = scmp.ne.s32.totalorder %s32, %s35
      %p44 = scmp.eq.s32.totalorder %s15, 1
      %p45 = por %p43, %p44
      %p46 = scmp.ne.s32.totalorder %s35, %s36
      %p47 = scmp.eq.s32.totalorder %s15, 0
      %p48 = por %p46, %p47
      %p49 = scmp.ne.s32.totalorder %s35, %s36
      %p50 = scmp.eq.s32.totalorder %s16, 1
      %p51 = por %p49, %p50
      %p53 = scmp.ne.s32.totalorder %s36, %s52
      %p54 = scmp.eq.s32.totalorder %s16, 0
      %p55 = por %p53, %p54
      %s56 = ssub.s32 %s18, %s25
      %s57 = ssub.s32 %s17, %s29
      %s58 = sor.u32 %s56, %s57
      %p59 = scmp.eq.s32.totalorder %s58, 0
      %s61 = sadd.s32 %s60, 1
      %s62 = scalar_select %p59, %s60, %s61
      %p65 = pneg %p59
      %p66 = scmp.eq.s32.totalorder %s10, 1
      %p67 = por %p65, %p66
      %p68 = scmp.ne.s32.totalorder %s60, %s63
      %p69 = scmp.eq.s32.totalorder %s10, 0
      %p70 = por %p68, %p69
      %p71 = scmp.ne.s32.totalorder %s60, %s63
      %p72 = scmp.eq.s32.totalorder %s15, 1
      %p73 = por %p71, %p72
      %p74 = scmp.ne.s32.totalorder %s63, %s64
      %p75 = scmp.eq.s32.totalorder %s15, 0
      %p76 = por %p74, %p75
      %p77 = scmp.ne.s32.totalorder %s63, %s64
      %p78 = scmp.eq.s32.totalorder %s16, 1
      %p79 = por %p77, %p78
      %p81 = scmp.ne.s32.totalorder %s64, %s80
      %p82 = scmp.eq.s32.totalorder %s16, 0
      %p83 = por %p81, %p82
      %s84 = ssub.s32 %s17, %s29
      %p85 = scmp.eq.s32.totalorder %s84, 0
      %s87 = sadd.s32 %s86, 1
      %s88 = scalar_select %p85, %s86, %s87
      %p91 = pneg %p85
      %p92 = scmp.eq.s32.totalorder %s10, 1
      %p93 = por %p91, %p92
      %p94 = scmp.ne.s32.totalorder %s86, %s89
      %p95 = scmp.eq.s32.totalorder %s10, 0
      %p96 = por %p94, %p95
      %p97 = scmp.ne.s32.totalorder %s86, %s89
      %p98 = scmp.eq.s32.totalorder %s15, 1
      %p99 = por %p97, %p98
      %p100 = scmp.ne.s32.totalorder %s89, %s90
      %p101 = scmp.eq.s32.totalorder %s15, 0
      %p102 = por %p100, %p101
      %p103 = scmp.ne.s32.totalorder %s89, %s90
      %p104 = scmp.eq.s32.totalorder %s16, 1
      %p105 = por %p103, %p104
      %p107 = scmp.ne.s32.totalorder %s90, %s106
      %p108 = scmp.eq.s32.totalorder %s16, 0
      %p109 = por %p107, %p108
      %s110 = ssub.s32 %s17, %s29
      %p111 = scmp.eq.s32.totalorder %s110, 0
      %s113 = sadd.s32 %s112, 1
      %s114 = scalar_select %p111, %s112, %s113
      %p117 = pneg %p111
      %p118 = scmp.eq.s32.totalorder %s10, 1
      %p119 = por %p117, %p118
      %p120 = scmp.ne.s32.totalorder %s112, %s115
      %p121 = scmp.eq.s32.totalorder %s10, 0
      %p122 = por %p120, %p121
      %p123 = scmp.ne.s32.totalorder %s112, %s115
      %p124 = scmp.eq.s32.totalorder %s15, 1
      %p125 = por %p123, %p124
      %p126 = scmp.ne.s32.totalorder %s115, %s116
      %p127 = scmp.eq.s32.totalorder %s15, 0
      %p128 = por %p126, %p127
      %p129 = scmp.ne.s32.totalorder %s115, %s116
      %p130 = scmp.eq.s32.totalorder %s16, 1
      %p131 = por %p129, %p130
      %p133 = scmp.ne.s32.totalorder %s116, %s132
      %p134 = scmp.eq.s32.totalorder %s16, 0
      %p135 = por %p133, %p134
      %p136 = scmp.le.s32.totalorder 1, %s10
      %p137 = scmp.lt.s32.totalorder %s10, 3
      %p138 = pnand %p136, %p137
      %p139 = pneg %p138
      // Predicated region
      $region9: #{_lambda_.2} parent=5 // pred_check
        _
      $region10: #{_lambda_.2} parent=5 // pred_check_branch
        %141 = sbr.rel (%p138) target = $region12
      $region11: #{_lambda_.2} parent=5 // pred_region
        %s142 = ssub.s32 %s10, 1
        // Predicated region
        $region13: #{_lambda_.2} parent=11 // pred_check
          %p143 = pneg %p48
        $region14: #{_lambda_.2} parent=11 // pred_check_branch
          %145 = sbr.rel (%p143) target = $region16
        $region15: #{_lambda_.2} parent=11 // pred_region
          %p146 = scmp.lt.s32.totalorder %s20, 0
          %s147 = scalar_select %p146, %s20, 0
          %s148 = smul.addr %s147, 4
          %s149 = scalar_lea.vmem %s0, %s148
        $region16: #{_lambda_.2} parent=11 // pred_fallthru
          _
      $region12: #{_lambda_.2} parent=5 // pred_fallthru
        _
      %p150 = scmp.lt.s32.totalorder %s10, 2
      // Predicated region
      $region17: #{_lambda_.2} parent=5 // pred_check
        %p151 = pneg %p150
      $region18: #{_lambda_.2} parent=5 // pred_check_branch
        %153 = sbr.rel (%p151) target = $region20
      $region19: #{_lambda_.2} parent=5 // pred_region
        // Predicated region
        $region21: #{_lambda_.2} parent=19 // pred_check
          %p154 = pneg %p70
        $region22: #{_lambda_.2} parent=19 // pred_check_branch
          %156 = sbr.rel (%p154) target = $region24
        $region23: #{_lambda_.2} parent=19 // pred_region
          %s157 = sand.u32 %s60, 1
          %s158 = sand.u32 %s60, 1
          %s159 = smul.addr %s158, 256
          %s160 = scalar_lea.vmem [#allocation3], %s159
          %s161 = smul.u32 16, %s18
          %s162 = smul.u32 4, %s17
          %s163 = smul.addr %s161, 8
          %s164 = sadd.s32 %s162, %s163
          %s165 = smul.addr %s164, 4
          %s166 = scalar_lea.vmem %s1, %s165
          // Predicated region
          $region25: #{_lambda_.2} parent=23 // pred_check
            _
          $region26: #{_lambda_.2} parent=23 // pred_check_branch
            %168 = sbr.rel (0) target = $region28
          $region27: #{_lambda_.2} parent=23 // pred_region
            // Predicated region
            $region29: #{_lambda_.2} parent=27 // pred_check
              _
            $region30: #{_lambda_.2} parent=27 // pred_check_branch
              %170 = sbr.rel (0) target = $region32
            $region31: #{_lambda_.2} parent=27 // pred_region
              loop: start=0, step=1, limit=1
              $region33: #{_lambda_.2} parent=31 // loop_pre_header
                _
              $region34: #{_lambda_.2} parent=31 // loop_header
                %s172 = sphi 0, %s176
                %p173 = scmp.ge.s32.totalorder %s172, 1
                %s177 = sphi %s166, %s166
                %s178 = sphi %s160, %s160
              $region35: #{_lambda_.2} parent=31 // loop_header_branch
                %175 = sbr.rel (%p173) target = $region39
              $region36: #{_lambda_.2} parent=31 // loop_body
                %v179 = vld [vmem:[%s177] sm:$0xff]
                %180 = vst [vmem:[%s178] sm:$0xff] %v179
                %v181 = vld [vmem:[%s177 + $0x8] sm:$0xff]
                %182 = vst [vmem:[%s178 + $0x8] sm:$0xff] %v181
                %v183 = vld [vmem:[%s177 + $0x20] sm:$0xff]
                %184 = vst [vmem:[%s178 + $0x10] sm:$0xff] %v183
                %v185 = vld [vmem:[%s177 + $0x28] sm:$0xff]
                %186 = vst [vmem:[%s178 + $0x18] sm:$0xff] %v185
                %v187 = vld [vmem:[%s177 + $0x40] sm:$0xff]
                %188 = vst [vmem:[%s178 + $0x20] sm:$0xff] %v187
                %v189 = vld [vmem:[%s177 + $0x48] sm:$0xff]
                %190 = vst [vmem:[%s178 + $0x28] sm:$0xff] %v189
                %v191 = vld [vmem:[%s177 + $0x60] sm:$0xff]
                %192 = vst [vmem:[%s178 + $0x30] sm:$0xff] %v191
                %v193 = vld [vmem:[%s177 + $0x68] sm:$0xff]
                %194 = vst [vmem:[%s178 + $0x38] sm:$0xff] %v193
                %v195 = vld [vmem:[%s177 + $0x80] sm:$0xff]
                %196 = vst [vmem:[%s178 + $0x40] sm:$0xff] %v195
                %v197 = vld [vmem:[%s177 + $0x88] sm:$0xff]
                %198 = vst [vmem:[%s178 + $0x48] sm:$0xff] %v197
                %v199 = vld [vmem:[%s177 + $0xa0] sm:$0xff]
                %200 = vst [vmem:[%s178 + $0x50] sm:$0xff] %v199
                %v201 = vld [vmem:[%s177 + $0xa8] sm:$0xff]
                %202 = vst [vmem:[%s178 + $0x58] sm:$0xff] %v201
                %v203 = vld [vmem:[%s177 + $0xc0] sm:$0xff]
                %204 = vst [vmem:[%s178 + $0x60] sm:$0xff] %v203
                %v205 = vld [vmem:[%s177 + $0xc8] sm:$0xff]
                %206 = vst [vmem:[%s178 + $0x68] sm:$0xff] %v205
                %v207 = vld [vmem:[%s177 + $0xe0] sm:$0xff]
                %208 = vst [vmem:[%s178 + $0x70] sm:$0xff] %v207
                %v209 = vld [vmem:[%s177 + $0xe8] sm:$0xff]
                %210 = vst [vmem:[%s178 + $0x78] sm:$0xff] %v209
                %v211 = vld [vmem:[%s177 + $0x100] sm:$0xff]
                %212 = vst [vmem:[%s178 + $0x80] sm:$0xff] %v211
                %v213 = vld [vmem:[%s177 + $0x108] sm:$0xff]
                %214 = vst [vmem:[%s178 + $0x88] sm:$0xff] %v213
                %v215 = vld [vmem:[%s177 + $0x120] sm:$0xff]
                %216 = vst [vmem:[%s178 + $0x90] sm:$0xff] %v215
                %v217 = vld [vmem:[%s177 + $0x128] sm:$0xff]
                %218 = vst [vmem:[%s178 + $0x98] sm:$0xff] %v217
                %v219 = vld [vmem:[%s177 + $0x140] sm:$0xff]
                %220 = vst [vmem:[%s178 + $0xa0] sm:$0xff] %v219
                %v221 = vld [vmem:[%s177 + $0x148] sm:$0xff]
                %222 = vst [vmem:[%s178 + $0xa8] sm:$0xff] %v221
                %v223 = vld [vmem:[%s177 + $0x160] sm:$0xff]
                %224 = vst [vmem:[%s178 + $0xb0] sm:$0xff] %v223
                %v225 = vld [vmem:[%s177 + $0x168] sm:$0xff]
                %226 = vst [vmem:[%s178 + $0xb8] sm:$0xff] %v225
                %v227 = vld [vmem:[%s177 + $0x180] sm:$0xff]
                %228 = vst [vmem:[%s178 + $0xc0] sm:$0xff] %v227
                %v229 = vld [vmem:[%s177 + $0x188] sm:$0xff]
                %230 = vst [vmem:[%s178 + $0xc8] sm:$0xff] %v229
                %v231 = vld [vmem:[%s177 + $0x1a0] sm:$0xff]
                %232 = vst [vmem:[%s178 + $0xd0] sm:$0xff] %v231
                %v233 = vld [vmem:[%s177 + $0x1a8] sm:$0xff]
                %234 = vst [vmem:[%s178 + $0xd8] sm:$0xff] %v233
                %v235 = vld [vmem:[%s177 + $0x1c0] sm:$0xff]
                %236 = vst [vmem:[%s178 + $0xe0] sm:$0xff] %v235
                %v237 = vld [vmem:[%s177 + $0x1c8] sm:$0xff]
                %238 = vst [vmem:[%s178 + $0xe8] sm:$0xff] %v237
                %v239 = vld [vmem:[%s177 + $0x1e0] sm:$0xff]
                %240 = vst [vmem:[%s178 + $0xf0] sm:$0xff] %v239
                %v241 = vld [vmem:[%s177 + $0x1e8] sm:$0xff]
                %242 = vst [vmem:[%s178 + $0xf8] sm:$0xff] %v241
              $region37: #{_lambda_.2} parent=31 // loop_footer
                %s176 = sadd.s32 1, %s172
              $region38: #{_lambda_.2} parent=31 // loop_footer_branch
                %171 = sbr.rel target = $region34
              $region39: #{_lambda_.2} parent=31 // loop_exit
                _
            $region32: #{_lambda_.2} parent=27 // pred_fallthru
              _
            // Predicated region
            $region40: #{_lambda_.2} parent=27 // pred_check
              _
            $region41: #{_lambda_.2} parent=27 // pred_check_branch
              %244 = sbr.rel target = $region43
            $region42: #{_lambda_.2} parent=27 // pred_region
              _
            $region43: #{_lambda_.2} parent=27 // pred_fallthru
              _
          $region28: #{_lambda_.2} parent=23 // pred_fallthru
            _
          %245 = vnop
        $region24: #{_lambda_.2} parent=19 // pred_fallthru
          _
      $region20: #{_lambda_.2} parent=5 // pred_fallthru
        _
      %p246 = scmp.le.s32.totalorder 1, %s10
      %p247 = scmp.lt.s32.totalorder %s10, 3
      %p248 = pnand %p246, %p247
      %p249 = pneg %p248
      // Predicated region
      $region44: #{_lambda_.2} parent=5 // pred_check
        _
      $region45: #{_lambda_.2} parent=5 // pred_check_branch
        %251 = sbr.rel (%p248) target = $region47
      $region46: #{_lambda_.2} parent=5 // pred_region
        %s252 = ssub.s32 %s10, 1
        %s253 = sand.u32 %s63, 1
        %s254 = sand.u32 %s63, 1
        %s255 = smul.addr %s254, 256
        %s256 = scalar_lea.vmem [#allocation3], %s255
        // Predicated region
        $region48: #{_lambda_.2} parent=46 // pred_check
          %p257 = pneg %p76
        $region49: #{_lambda_.2} parent=46 // pred_check_branch
          %259 = sbr.rel (%p257) target = $region51
        $region50: #{_lambda_.2} parent=46 // pred_region
          _
        $region51: #{_lambda_.2} parent=46 // pred_fallthru
          _
        %p260 = scmp.lt.s32.totalorder %s20, 0
        %s261 = scalar_select %p260, %s20, 0
        %s262 = smul.addr %s261, 4
        %s263 = scalar_lea.vmem %s0, %s262
        %p264 = pneg %p48
        %p265 = pneg %p45
        %s266 = sand.u32 %s63, 1
        %s267 = sand.u32 %s63, 1
        %s268 = smul.addr %s267, 256
        %s269 = scalar_lea.vmem [#allocation3], %s268
        %p270 = pneg %p76
        %p271 = pneg %p73
        %p272 = pneg %p102
        %p273 = pneg %p99
        %s274 = sand.u32 %s89, 1
        %s275 = sand.u32 %s89, 1
        %s276 = smul.addr %s275, 32
        %s277 = scalar_lea.vmem [#allocation4], %s276
        %p278 = pneg %p128
        %p279 = pneg %p125
        %p280 = scmp.lt.s32.totalorder %s19, 1
        %s281 = scalar_select %p280, %s19, 1
        %s282 = smul.addr %s281, 2
        %s283 = smul.addr %s282, 8
        %s284 = scalar_lea.vmem %s3, %s283
        %p285 = scmp.lt.s32.totalorder %s20, 0
        %s286 = scalar_select %p285, %s20, 0
        %s287 = smul.addr %s286, 4
        %s288 = scalar_lea.vmem %s0, %s287
        %s289 = smul.u32 16, %s20
        %s290 = smul.u32 4, %s19
        %s291 = smul.u32 4, %s19
        %p292 = scmp.lt.s32.totalorder %s19, 1
        %s293 = scalar_select %p292, %s19, 1
        %s294 = smul.addr %s293, 2
        %s295 = smul.addr %s294, 8
        %s296 = scalar_lea.vmem %s3, %s295
        %p298 = scmp.eq.s32.totalorder %s20, 0
        // Predicated region
        $region52: #{_lambda_.2} parent=46 // pred_check
          %p299 = pneg %p298
        $region53: #{_lambda_.2} parent=46 // pred_check_branch
          %301 = sbr.rel (%p299) target = $region55
        $region54: #{_lambda_.2} parent=46 // pred_region
          %302 = vst [vmem:[#allocation2] sm:$0xff] 0.0
          %303 = vst [vmem:[#allocation2 + $0x8] sm:$0xff] 0.0
          %304 = vst [vmem:[#allocation2 + $0x10] sm:$0xff] 0.0
          %305 = vst [vmem:[#allocation2 + $0x18] sm:$0xff] 0.0
          %306 = vst [vmem:[#allocation2 + $0x20] sm:$0xff] 0.0
          %307 = vst [vmem:[#allocation2 + $0x28] sm:$0xff] 0.0
          %308 = vst [vmem:[#allocation2 + $0x30] sm:$0xff] 0.0
          %309 = vst [vmem:[#allocation2 + $0x38] sm:$0xff] 0.0
        $region55: #{_lambda_.2} parent=46 // pred_fallthru
          _
        %v310 = vld [vmem:[#allocation2] sm:$0xff]
        %v311 = vld [vmem:[#allocation2 + $0x8] sm:$0xff]
        %v312 = vld [vmem:[#allocation2 + $0x10] sm:$0xff]
        %v313 = vld [vmem:[#allocation2 + $0x18] sm:$0xff]
        %v314 = vld [vmem:[#allocation2 + $0x20] sm:$0xff]
        %v315 = vld [vmem:[#allocation2 + $0x28] sm:$0xff]
        %v316 = vld [vmem:[#allocation2 + $0x30] sm:$0xff]
        %v317 = vld [vmem:[#allocation2 + $0x38] sm:$0xff]
        %v318 = vld [vmem:[%s288] sm:$0xf]
        %v319 = vld [vmem:[%s288 + $0x4] sm:$0xf]
        %v320 = vld [vmem:[%s256] sm:$0xff]
        %v321 = vld [vmem:[%s256 + $0x8] sm:$0xff]
        %v322 = vld [vmem:[%s256 + $0x10] sm:$0xff]
        %v323 = vld [vmem:[%s256 + $0x18] sm:$0xff]
        %v324 = vld [vmem:[%s256 + $0x20] sm:$0xff]
        %v325 = vld [vmem:[%s256 + $0x28] sm:$0xff]
        %v326 = vld [vmem:[%s256 + $0x30] sm:$0xff]
        %v327 = vld [vmem:[%s256 + $0x38] sm:$0xff]
        %v328 = vld [vmem:[%s256 + $0x40] sm:$0xff]
        %v329 = vld [vmem:[%s256 + $0x48] sm:$0xff]
        %v330 = vld [vmem:[%s256 + $0x50] sm:$0xff]
        %v331 = vld [vmem:[%s256 + $0x58] sm:$0xff]
        %v332 = vld [vmem:[%s256 + $0x60] sm:$0xff]
        %v333 = vld [vmem:[%s256 + $0x68] sm:$0xff]
        %v334 = vld [vmem:[%s256 + $0x70] sm:$0xff]
        %v335 = vld [vmem:[%s256 + $0x78] sm:$0xff]
        %v336 = vld [vmem:[%s256 + $0x80] sm:$0xff]
        %v337 = vld [vmem:[%s256 + $0x88] sm:$0xff]
        %v338 = vld [vmem:[%s256 + $0x90] sm:$0xff]
        %v339 = vld [vmem:[%s256 + $0x98] sm:$0xff]
        %v340 = vld [vmem:[%s256 + $0xa0] sm:$0xff]
        %v341 = vld [vmem:[%s256 + $0xa8] sm:$0xff]
        %v342 = vld [vmem:[%s256 + $0xb0] sm:$0xff]
        %v343 = vld [vmem:[%s256 + $0xb8] sm:$0xff]
        %v344 = vld [vmem:[%s256 + $0xc0] sm:$0xff]
        %v345 = vld [vmem:[%s256 + $0xc8] sm:$0xff]
        %v346 = vld [vmem:[%s256 + $0xd0] sm:$0xff]
        %v347 = vld [vmem:[%s256 + $0xd8] sm:$0xff]
        %v348 = vld [vmem:[%s256 + $0xe0] sm:$0xff]
        %v349 = vld [vmem:[%s256 + $0xe8] sm:$0xff]
        %v350 = vld [vmem:[%s256 + $0xf0] sm:$0xff]
        %v351 = vld [vmem:[%s256 + $0xf8] sm:$0xff]
        %v354 = vunpack.c.l.b16 %v318
        %v355 = vunpack.c.l.b16 %v319
        %v356 = vpack.c.b16 %v355, %v354
        %v390 = vunpack.c.l.b16 %v320
        %v391 = vunpack.c.h.b16 %v320
        %v392 = vunpack.c.l.b16 %v321
        %v393 = vunpack.c.h.b16 %v321
        %v394 = vunpack.c.l.b16 %v322
        %v395 = vunpack.c.h.b16 %v322
        %v396 = vunpack.c.l.b16 %v323
        %v397 = vunpack.c.h.b16 %v323
        %v398 = vunpack.c.l.b16 %v324
        %v399 = vunpack.c.h.b16 %v324
        %v400 = vunpack.c.l.b16 %v325
        %v401 = vunpack.c.h.b16 %v325
        %v402 = vunpack.c.l.b16 %v326
        %v403 = vunpack.c.h.b16 %v326
        %v404 = vunpack.c.l.b16 %v327
        %v405 = vunpack.c.h.b16 %v327
        %v406 = vunpack.c.l.b16 %v328
        %v407 = vunpack.c.h.b16 %v328
        %v408 = vunpack.c.l.b16 %v329
        %v409 = vunpack.c.h.b16 %v329
        %v410 = vunpack.c.l.b16 %v330
        %v411 = vunpack.c.h.b16 %v330
        %v412 = vunpack.c.l.b16 %v331
        %v413 = vunpack.c.h.b16 %v331
        %v414 = vunpack.c.l.b16 %v332
        %v415 = vunpack.c.h.b16 %v332
        %v416 = vunpack.c.l.b16 %v333
        %v417 = vunpack.c.h.b16 %v333
        %v418 = vunpack.c.l.b16 %v334
        %v419 = vunpack.c.h.b16 %v334
        %v420 = vunpack.c.l.b16 %v335
        %v421 = vunpack.c.h.b16 %v335
        %v422 = vunpack.c.l.b16 %v336
        %v423 = vunpack.c.h.b16 %v336
        %v424 = vunpack.c.l.b16 %v337
        %v425 = vunpack.c.h.b16 %v337
        %v426 = vunpack.c.l.b16 %v338
        %v427 = vunpack.c.h.b16 %v338
        %v428 = vunpack.c.l.b16 %v339
        %v429 = vunpack.c.h.b16 %v339
        %v430 = vunpack.c.l.b16 %v340
        %v431 = vunpack.c.h.b16 %v340
        %v432 = vunpack.c.l.b16 %v341
        %v433 = vunpack.c.h.b16 %v341
        %v434 = vunpack.c.l.b16 %v342
        %v435 = vunpack.c.h.b16 %v342
        %v436 = vunpack.c.l.b16 %v343
        %v437 = vunpack.c.h.b16 %v343
        %v438 = vunpack.c.l.b16 %v344
        %v439 = vunpack.c.h.b16 %v344
        %v440 = vunpack.c.l.b16 %v345
        %v441 = vunpack.c.h.b16 %v345
        %v442 = vunpack.c.l.b16 %v346
        %v443 = vunpack.c.h.b16 %v346
        %v444 = vunpack.c.l.b16 %v347
        %v445 = vunpack.c.h.b16 %v347
        %v446 = vunpack.c.l.b16 %v348
        %v447 = vunpack.c.h.b16 %v348
        %v448 = vunpack.c.l.b16 %v349
        %v449 = vunpack.c.h.b16 %v349
        %v450 = vunpack.c.l.b16 %v350
        %v451 = vunpack.c.h.b16 %v350
        %v452 = vunpack.c.l.b16 %v351
        %v453 = vunpack.c.h.b16 %v351
        %v454 = vpack.c.b16 %v394, %v390
        %v455 = vpack.c.b16 %v395, %v391
        %v456 = vpack.c.b16 %v396, %v392
        %v457 = vpack.c.b16 %v397, %v393
        %v458 = vpack.c.b16 %v402, %v398
        %v459 = vpack.c.b16 %v403, %v399
        %v460 = vpack.c.b16 %v404, %v400
        %v461 = vpack.c.b16 %v405, %v401
        %v462 = vpack.c.b16 %v410, %v406
        %v463 = vpack.c.b16 %v411, %v407
        %v464 = vpack.c.b16 %v412, %v408
        %v465 = vpack.c.b16 %v413, %v409
        %v466 = vpack.c.b16 %v418, %v414
        %v467 = vpack.c.b16 %v419, %v415
        %v468 = vpack.c.b16 %v420, %v416
        %v469 = vpack.c.b16 %v421, %v417
        %v470 = vpack.c.b16 %v426, %v422
        %v471 = vpack.c.b16 %v427, %v423
        %v472 = vpack.c.b16 %v428, %v424
        %v473 = vpack.c.b16 %v429, %v425
        %v474 = vpack.c.b16 %v434, %v430
        %v475 = vpack.c.b16 %v435, %v431
        %v476 = vpack.c.b16 %v436, %v432
        %v477 = vpack.c.b16 %v437, %v433
        %v478 = vpack.c.b16 %v442, %v438
        %v479 = vpack.c.b16 %v443, %v439
        %v480 = vpack.c.b16 %v444, %v440
        %v481 = vpack.c.b16 %v445, %v441
        %v482 = vpack.c.b16 %v450, %v446
        %v483 = vpack.c.b16 %v451, %v447
        %v484 = vpack.c.b16 %v452, %v448
        %v485 = vpack.c.b16 %v453, %v449
        %518 = vmatprep.subr.bf16.mxu0 %v455
        %519 = vmatpush1.bf16.msra.mxu0 %v454
        %520 = vmatprep.subr.bf16.mxu0 %v459
        %521 = vmatpush1.bf16.msra.mxu0 %v458
        %522 = vmatprep.subr.bf16.mxu0 %v463
        %523 = vmatpush1.bf16.msra.mxu0 %v462
        %524 = vmatprep.subr.bf16.mxu0 %v467
        %525 = vmatpush1.bf16.msra.mxu0 %v466
        %526 = vmatprep.subr.bf16.mxu0 %v471
        %527 = vmatpush1.bf16.msra.mxu0 %v470
        %528 = vmatprep.subr.bf16.mxu0 %v475
        %529 = vmatpush1.bf16.msra.mxu0 %v474
        %530 = vmatprep.subr.bf16.mxu0 %v479
        %531 = vmatpush1.bf16.msra.mxu0 %v478
        %532 = vmatprep.subr.bf16.mxu0 %v483
        %533 = vmatpush1.bf16.msra.mxu0 %v482
        %534 = vmatprep.subr.bf16.mxu0 0
        %535 = vmatpush1.bf16.msra.mxu0 0
        %536 = vmatprep.subr.bf16.mxu0 0
        %537 = vmatpush1.bf16.msra.mxu0 0
        %538 = vmatprep.subr.bf16.mxu0 0
        %539 = vmatpush1.bf16.msra.mxu0 0
        %540 = vmatprep.subr.bf16.mxu0 0
        %541 = vmatpush1.bf16.msra.mxu0 0
        %542 = vmatprep.subr.bf16.mxu0 0
        %543 = vmatpush1.bf16.msra.mxu0 0
        %544 = vmatprep.subr.bf16.mxu0 0
        %545 = vmatpush1.bf16.msra.mxu0 0
        %546 = vmatprep.subr.bf16.mxu0 0
        %547 = vmatpush1.bf16.msra.mxu0 0
        %548 = vmatprep.subr.bf16.mxu0 0
        %549 = vmatpush1.bf16.msra.mxu0 0
        %550 = vmatprep.mubr.bf16.mxu0 0
        %551 = vmatmul.mubr.bf16.gmra.mrb[0].mxu0 %v356
        %v552 = vpop.f32.mrb[0].mxu0
        %v553 = vadd.f32 0.0, %v552
        %v554 = vpop.f32.mrb[0].mxu0
        %v555 = vadd.f32 0.0, %v554
        %v556 = vpop.f32.mrb[0].mxu0
        %v557 = vadd.f32 0.0, %v556
        %v558 = vpop.f32.mrb[0].mxu0
        %v559 = vadd.f32 0.0, %v558
        %560 = vdwg.mxu0
        %561 = vmatprep.subr.bf16.mxu0 %v457
        %562 = vmatpush1.bf16.msra.mxu0 %v456
        %563 = vmatprep.subr.bf16.mxu0 %v461
        %564 = vmatpush1.bf16.msra.mxu0 %v460
        %565 = vmatprep.subr.bf16.mxu0 %v465
        %566 = vmatpush1.bf16.msra.mxu0 %v464
        %567 = vmatprep.subr.bf16.mxu0 %v469
        %568 = vmatpush1.bf16.msra.mxu0 %v468
        %569 = vmatprep.subr.bf16.mxu0 %v473
        %570 = vmatpush1.bf16.msra.mxu0 %v472
        %571 = vmatprep.subr.bf16.mxu0 %v477
        %572 = vmatpush1.bf16.msra.mxu0 %v476
        %573 = vmatprep.subr.bf16.mxu0 %v481
        %574 = vmatpush1.bf16.msra.mxu0 %v480
        %575 = vmatprep.subr.bf16.mxu0 %v485
        %576 = vmatpush1.bf16.msra.mxu0 %v484
        %577 = vmatprep.subr.bf16.mxu0 0
        %578 = vmatpush1.bf16.msra.mxu0 0
        %579 = vmatprep.subr.bf16.mxu0 0
        %580 = vmatpush1.bf16.msra.mxu0 0
        %581 = vmatprep.subr.bf16.mxu0 0
        %582 = vmatpush1.bf16.msra.mxu0 0
        %583 = vmatprep.subr.bf16.mxu0 0
        %584 = vmatpush1.bf16.msra.mxu0 0
        %585 = vmatprep.subr.bf16.mxu0 0
        %586 = vmatpush1.bf16.msra.mxu0 0
        %587 = vmatprep.subr.bf16.mxu0 0
        %588 = vmatpush1.bf16.msra.mxu0 0
        %589 = vmatprep.subr.bf16.mxu0 0
        %590 = vmatpush1.bf16.msra.mxu0 0
        %591 = vmatprep.subr.bf16.mxu0 0
        %592 = vmatpush1.bf16.msra.mxu0 0
        %593 = vmatprep.mubr.bf16.mxu0 0
        %594 = vmatmul.mubr.bf16.gmra.mrb[0].mxu0 %v356
        %v595 = vpop.f32.mrb[0].mxu0
        %v596 = vadd.f32 0.0, %v595
        %v597 = vpop.f32.mrb[0].mxu0
        %v598 = vadd.f32 0.0, %v597
        %v599 = vpop.f32.mrb[0].mxu0
        %v600 = vadd.f32 0.0, %v599
        %v601 = vpop.f32.mrb[0].mxu0
        %v602 = vadd.f32 0.0, %v601
        %603 = vdwg.mxu0
        %v604 = vadd.f32 %v310, %v553
        %v605 = vadd.f32 %v311, %v555
        %v606 = vadd.f32 %v312, %v596
        %v607 = vadd.f32 %v313, %v598
        %v608 = vadd.f32 %v314, %v557
        %v609 = vadd.f32 %v315, %v559
        %v610 = vadd.f32 %v316, %v600
        %v611 = vadd.f32 %v317, %v602
        %612 = vst [vmem:[#allocation2] sm:$0xff] %v604
        %613 = vst [vmem:[#allocation2 + $0x8] sm:$0xff] %v605
        %614 = vst [vmem:[#allocation2 + $0x10] sm:$0xff] %v606
        %615 = vst [vmem:[#allocation2 + $0x18] sm:$0xff] %v607
        %616 = vst [vmem:[#allocation2 + $0x20] sm:$0xff] %v608
        %617 = vst [vmem:[#allocation2 + $0x28] sm:$0xff] %v609
        %618 = vst [vmem:[#allocation2 + $0x30] sm:$0xff] %v610
        %619 = vst [vmem:[#allocation2 + $0x38] sm:$0xff] %v611
        // Predicated region
        $region56: #{_lambda_.2} parent=46 // pred_check
          %p620 = pneg %p298
        $region57: #{_lambda_.2} parent=46 // pred_check_branch
          %622 = sbr.rel (%p620) target = $region59
        $region58: #{_lambda_.2} parent=46 // pred_region
          %v623 = vld [vmem:[#allocation2] sm:$0xff]
          %v624 = vld [vmem:[#allocation2 + $0x8] sm:$0xff]
          %v625 = vld [vmem:[#allocation2 + $0x10] sm:$0xff]
          %v626 = vld [vmem:[#allocation2 + $0x18] sm:$0xff]
          %v627 = vld [vmem:[#allocation2 + $0x20] sm:$0xff]
          %v628 = vld [vmem:[#allocation2 + $0x28] sm:$0xff]
          %v629 = vld [vmem:[#allocation2 + $0x30] sm:$0xff]
          %v630 = vld [vmem:[#allocation2 + $0x38] sm:$0xff]
          %v631 = vpack.c.bf16 %v627, %v623
          %v632 = vpack.c.bf16 %v628, %v624
          %v633 = vpack.c.bf16 %v629, %v625
          %v634 = vpack.c.bf16 %v630, %v626
          %v639 = vunpack.c.l.b16 %v631
          %v640 = vunpack.c.l.b16 %v632
          %v641 = vunpack.c.l.b16 %v633
          %v642 = vunpack.c.l.b16 %v634
          %v643 = vunpack.c.h.b16 %v631
          %v644 = vunpack.c.h.b16 %v632
          %v645 = vunpack.c.h.b16 %v633
          %v646 = vunpack.c.h.b16 %v634
          %v647 = vpack.c.b16 %v640, %v639
          %v648 = vpack.c.b16 %v642, %v641
          %v649 = vpack.c.b16 %v644, %v643
          %v650 = vpack.c.b16 %v646, %v645
          %655 = vst [vmem:[%s277] sm:$0xff] %v647
          %656 = vst [vmem:[%s277 + $0x8] sm:$0xff] %v648
          %657 = vst [vmem:[%s277 + $0x10] sm:$0xff] %v649
          %658 = vst [vmem:[%s277 + $0x18] sm:$0xff] %v650
          %v659 = vadd.f32 %v623, %v624
          %v660 = vadd.f32 %v659, %v625
          %v661 = vadd.f32 %v660, %v626
          %662 = vadd.xlane.f32.xlu0 %v661
          %v663 = vpop.xlane.xlu0 %662
          %v664 = vadd.f32 %v627, %v628
          %v665 = vadd.f32 %v664, %v629
          %v666 = vadd.f32 %v665, %v630
          %667 = vadd.xlane.f32.xlu0 %v666
          %v668 = vpop.xlane.xlu0 %667
          %v669 = vmul.f32 %v623, %v623
          %v670 = vmul.f32 %v624, %v624
          %v671 = vmul.f32 %v625, %v625
          %v672 = vmul.f32 %v626, %v626
          %v673 = vmul.f32 %v627, %v627
          %v674 = vmul.f32 %v628, %v628
          %v675 = vmul.f32 %v629, %v629
          %v676 = vmul.f32 %v630, %v630
          %v677 = vadd.f32 %v669, %v670
          %v678 = vadd.f32 %v677, %v671
          %v679 = vadd.f32 %v678, %v672
          %680 = vadd.xlane.f32.xlu0 %v679
          %v681 = vpop.xlane.xlu0 %680
          %v682 = vadd.f32 %v673, %v674
          %v683 = vadd.f32 %v682, %v675
          %v684 = vadd.f32 %v683, %v676
          %685 = vadd.xlane.f32.xlu0 %v684
          %v686 = vpop.xlane.xlu0 %685
          %v687 = vlaneseq
          %v688 = vand.u32 %v687, 127
          %vm689 = vcmp.eq.s32.totalorder %v688, 0
          %v690 = vsel %vm689, %v663, %v681
          %v691 = vsel %vm689, %v668, %v686
          %vm692 = vcmask 15360
          %693 = vst.msk [vmem:[%s296] sm:$0xff] %vm692, %v690
          %694 = vst.msk [vmem:[%s296 + $0x8] sm:$0xff] %vm692, %v691
        $region59: #{_lambda_.2} parent=46 // pred_fallthru
          _
        %s695 = sand.u32 %s89, 1
        %s696 = sand.u32 %s89, 1
        %s697 = smul.addr %s696, 32
        %s698 = scalar_lea.vmem [#allocation4], %s697
        %p699 = scmp.lt.s32.totalorder %s19, 1
        %s700 = scalar_select %p699, %s19, 1
        %s701 = smul.addr %s700, 2
        %s702 = smul.addr %s701, 8
        %s703 = scalar_lea.vmem %s3, %s702
        // Predicated region
        $region60: #{_lambda_.2} parent=46 // pred_check
          %p704 = pneg %p99
        $region61: #{_lambda_.2} parent=46 // pred_check_branch
          %706 = sbr.rel (%p704) target = $region63
        $region62: #{_lambda_.2} parent=46 // pred_region
          %s707 = smul.u32 4, %s19
          %s708 = smul.addr %s707, 4
          %s709 = scalar_lea.vmem %s2, %s708
          // Predicated region
          $region64: #{_lambda_.2} parent=62 // pred_check
            _
          $region65: #{_lambda_.2} parent=62 // pred_check_branch
            %711 = sbr.rel (0) target = $region67
          $region66: #{_lambda_.2} parent=62 // pred_region
            // Predicated region
            $region68: #{_lambda_.2} parent=66 // pred_check
              _
            $region69: #{_lambda_.2} parent=66 // pred_check_branch
              %713 = sbr.rel (0) target = $region71
            $region70: #{_lambda_.2} parent=66 // pred_region
              loop: start=0, step=1, limit=1
              $region72: #{_lambda_.2} parent=70 // loop_pre_header
                _
              $region73: #{_lambda_.2} parent=70 // loop_header
                %s715 = sphi 0, %s719
                %p716 = scmp.ge.s32.totalorder %s715, 1
                %s720 = sphi %s698, %s698
                %s721 = sphi %s709, %s709
              $region74: #{_lambda_.2} parent=70 // loop_header_branch
                %718 = sbr.rel (%p716) target = $region78
              $region75: #{_lambda_.2} parent=70 // loop_body
                %v722 = vld [vmem:[%s720] sm:$0xff]
                %723 = vst [vmem:[%s721] sm:$0xff] %v722
                %v724 = vld [vmem:[%s720 + $0x8] sm:$0xff]
                %725 = vst [vmem:[%s721 + $0x8] sm:$0xff] %v724
                %v726 = vld [vmem:[%s720 + $0x10] sm:$0xff]
                %727 = vst [vmem:[%s721 + $0x20] sm:$0xff] %v726
                %v728 = vld [vmem:[%s720 + $0x18] sm:$0xff]
                %729 = vst [vmem:[%s721 + $0x28] sm:$0xff] %v728
              $region76: #{_lambda_.2} parent=70 // loop_footer
                %s719 = sadd.s32 1, %s715
              $region77: #{_lambda_.2} parent=70 // loop_footer_branch
                %714 = sbr.rel target = $region73
              $region78: #{_lambda_.2} parent=70 // loop_exit
                _
            $region71: #{_lambda_.2} parent=66 // pred_fallthru
              _
            // Predicated region
            $region79: #{_lambda_.2} parent=66 // pred_check
              _
            $region80: #{_lambda_.2} parent=66 // pred_check_branch
              %731 = sbr.rel target = $region82
            $region81: #{_lambda_.2} parent=66 // pred_region
              _
            $region82: #{_lambda_.2} parent=66 // pred_fallthru
              _
          $region67: #{_lambda_.2} parent=62 // pred_fallthru
            _
          %732 = vnop
        $region63: #{_lambda_.2} parent=46 // pred_fallthru
          _
        // Predicated region
        $region83: #{_lambda_.2} parent=46 // pred_check
          %p733 = pneg %p125
        $region84: #{_lambda_.2} parent=46 // pred_check_branch
          %735 = sbr.rel (%p733) target = $region86
        $region85: #{_lambda_.2} parent=46 // pred_region
          _
        $region86: #{_lambda_.2} parent=46 // pred_fallthru
          _
      $region47: #{_lambda_.2} parent=5 // pred_fallthru
        _
      %p736 = scmp.le.s32.totalorder 2, %s10
      // Predicated region
      $region87: #{_lambda_.2} parent=5 // pred_check
        %p737 = pneg %p736
      $region88: #{_lambda_.2} parent=5 // pred_check_branch
        %739 = sbr.rel (%p737) target = $region90
      $region89: #{_lambda_.2} parent=5 // pred_region
        %s740 = ssub.s32 %s10, 2
        // Predicated region
        $region91: #{_lambda_.2} parent=89 // pred_check
          %p741 = pneg %p105
        $region92: #{_lambda_.2} parent=89 // pred_check_branch
          %743 = sbr.rel (%p741) target = $region94
        $region93: #{_lambda_.2} parent=89 // pred_region
          %s744 = sand.u32 %s90, 1
          %s745 = sand.u32 %s90, 1
          %s746 = smul.addr %s745, 32
          %s747 = scalar_lea.vmem [#allocation4], %s746
        $region94: #{_lambda_.2} parent=89 // pred_fallthru
          _
        // Predicated region
        $region95: #{_lambda_.2} parent=89 // pred_check
          %p748 = pneg %p131
        $region96: #{_lambda_.2} parent=89 // pred_check_branch
          %750 = sbr.rel (%p748) target = $region98
        $region97: #{_lambda_.2} parent=89 // pred_region
          %p751 = scmp.lt.s32.totalorder %s21, 1
          %s752 = scalar_select %p751, %s21, 1
          %s753 = smul.addr %s752, 2
          %s754 = smul.addr %s753, 8
          %s755 = scalar_lea.vmem %s3, %s754
        $region98: #{_lambda_.2} parent=89 // pred_fallthru
          _
      $region90: #{_lambda_.2} parent=5 // pred_fallthru
        _
    $region6: #{_lambda_.2} parent=1 // loop_footer
      %s14 = sadd.s32 1, %s10
    $region7: #{_lambda_.2} parent=1 // loop_footer_branch
      %9 = sbr.rel target = $region3
    $region8: #{_lambda_.2} parent=1 // loop_exit
      _

// kernel: _lambda_.3
$region0: #{_lambda_.3}
  #allocation0 [shape = 'u32[]', space=smem, size = 0x4, offset = 0x4, fixed_abs, tag = 'smem constant byte address 0x4 - core index']
  #allocation1 [shape = 'u32[144,128]{1,0:T(1,128)}', space=vmem, size = 0x12000, scoped, tag = 'internal scratch']
  %s0 = inlined_call_operand.vmem [shape: bf16[16,1024], index: 0, kind: input, shape index: {}]
  %s1 = inlined_call_operand.vmem [shape: f32[2,16,1], index: 1, kind: input, shape index: {}]
  %s2 = inlined_call_operand.vmem [shape: f32[16,1024], index: 2, kind: output, shape index: {}]
  %s3 = sld [smem:[#allocation0]]
  $region83: #{_lambda_.3} parent=0
    _
  %s5 = ssub.s32 1, %s3
  %s6 = scalar_select 0, %s5, %s3
  $region1: #{_lambda_.3} parent=0
    #allocation2 [shape = 'u8[32768]{0}', space=vmem, size = 0x8000, scoped, tag = 'input window, operand 0']
    #allocation3 [shape = 'u8[65536]{0}', space=vmem, size = 0x10000, scoped, tag = 'output window, operand 0']
    loop: start=0, step=1, limit=4
    $region2: #{_lambda_.3} parent=1 // loop_pre_header
      _
    $region3: #{_lambda_.3} parent=1 // loop_header
      %s8 = sphi 0, %s12
      %p9 = scmp.ge.s32.totalorder %s8, 4
      %s18 = sphi 0, %s20
      %s21 = sphi 0, %s18
      %s22 = sphi 0, %s21
      %s38 = sphi 0, %s22
      %s42 = sphi 0, %s42
      %s44 = sphi 0, %s42
      %s45 = sphi 0, %s44
      %s59 = sphi 0, %s45
      %s65 = sphi 0, %s67
      %s68 = sphi 0, %s65
      %s69 = sphi 0, %s68
      %s85 = sphi 0, %s69
    $region4: #{_lambda_.3} parent=1 // loop_header_branch
      %11 = sbr.rel (%p9) target = $region8
    $region5: #{_lambda_.3} parent=1 // loop_body
      %s13 = ssub.s32 %s8, 1
      %s14 = ssub.s32 %s8, 2
      %s15 = sadd.s32 %s8, 1
      %s16 = ssub.s32 %s8, %s15
      %p17 = scmp.eq.s32.totalorder %s16, 0
      %s19 = sadd.s32 %s18, 1
      %s20 = scalar_select %p17, %s18, %s19
      %p23 = pneg %p17
      %p24 = scmp.eq.s32.totalorder %s8, 1
      %p25 = por %p23, %p24
      %p26 = scmp.ne.s32.totalorder %s18, %s21
      %p27 = scmp.eq.s32.totalorder %s8, 0
      %p28 = por %p26, %p27
      %p29 = scmp.ne.s32.totalorder %s18, %s21
      %p30 = scmp.eq.s32.totalorder %s13, 1
      %p31 = por %p29, %p30
      %p32 = scmp.ne.s32.totalorder %s21, %s22
      %p33 = scmp.eq.s32.totalorder %s13, 0
      %p34 = por %p32, %p33
      %p35 = scmp.ne.s32.totalorder %s21, %s22
      %p36 = scmp.eq.s32.totalorder %s14, 1
      %p37 = por %p35, %p36
      %p39 = scmp.ne.s32.totalorder %s22, %s38
      %p40 = scmp.eq.s32.totalorder %s14, 0
      %p41 = por %p39, %p40
      %s43 = sadd.s32 %s42, 1
      %p46 = scmp.eq.s32.totalorder %s8, 1
      %p47 = scmp.ne.s32.totalorder %s42, %s44
      %p48 = scmp.eq.s32.totalorder %s8, 0
      %p49 = por %p47, %p48
      %p50 = scmp.ne.s32.totalorder %s42, %s44
      %p51 = scmp.eq.s32.totalorder %s13, 1
      %p52 = por %p50, %p51
      %p53 = scmp.ne.s32.totalorder %s44, %s45
      %p54 = scmp.eq.s32.totalorder %s13, 0
      %p55 = por %p53, %p54
      %p56 = scmp.ne.s32.totalorder %s44, %s45
      %p57 = scmp.eq.s32.totalorder %s14, 1
      %p58 = por %p56, %p57
      %p60 = scmp.ne.s32.totalorder %s45, %s59
      %p61 = scmp.eq.s32.totalorder %s14, 0
      %p62 = por %p60, %p61
      %s63 = ssub.s32 %s8, %s15
      %p64 = scmp.eq.s32.totalorder %s63, 0
      %s66 = sadd.s32 %s65, 1
      %s67 = scalar_select %p64, %s65, %s66
      %p70 = pneg %p64
      %p71 = scmp.eq.s32.totalorder %s8, 1
      %p72 = por %p70, %p71
      %p73 = scmp.ne.s32.totalorder %s65, %s68
      %p74 = scmp.eq.s32.totalorder %s8, 0
      %p75 = por %p73, %p74
      %p76 = scmp.ne.s32.totalorder %s65, %s68
      %p77 = scmp.eq.s32.totalorder %s13, 1
      %p78 = por %p76, %p77
      %p79 = scmp.ne.s32.totalorder %s68, %s69
      %p80 = scmp.eq.s32.totalorder %s13, 0
      %p81 = por %p79, %p80
      %p82 = scmp.ne.s32.totalorder %s68, %s69
      %p83 = scmp.eq.s32.totalorder %s14, 1
      %p84 = por %p82, %p83
      %p86 = scmp.ne.s32.totalorder %s69, %s85
      %p87 = scmp.eq.s32.totalorder %s14, 0
      %p88 = por %p86, %p87
      %p89 = scmp.le.s32.totalorder 1, %s8
      %p90 = scmp.lt.s32.totalorder %s8, 3
      %p91 = pnand %p89, %p90
      %p92 = pneg %p91
      // Predicated region
      $region9: #{_lambda_.3} parent=5 // pred_check
        _
      $region10: #{_lambda_.3} parent=5 // pred_check_branch
        %94 = sbr.rel (%p91) target = $region12
      $region11: #{_lambda_.3} parent=5 // pred_region
        %s95 = ssub.s32 %s8, 1
        // Predicated region
        $region13: #{_lambda_.3} parent=11 // pred_check
          %p96 = pneg %p55
        $region14: #{_lambda_.3} parent=11 // pred_check_branch
          %98 = sbr.rel (%p96) target = $region16
        $region15: #{_lambda_.3} parent=11 // pred_region
          _
        $region16: #{_lambda_.3} parent=11 // pred_fallthru
          _
      $region12: #{_lambda_.3} parent=5 // pred_fallthru
        _
      %p99 = scmp.lt.s32.totalorder %s8, 2
      // Predicated region
      $region17: #{_lambda_.3} parent=5 // pred_check
        %p100 = pneg %p99
      $region18: #{_lambda_.3} parent=5 // pred_check_branch
        %102 = sbr.rel (%p100) target = $region20
      $region19: #{_lambda_.3} parent=5 // pred_region
        // Predicated region
        $region21: #{_lambda_.3} parent=19 // pred_check
          %p103 = pneg %p28
        $region22: #{_lambda_.3} parent=19 // pred_check_branch
          %105 = sbr.rel (%p103) target = $region24
        $region23: #{_lambda_.3} parent=19 // pred_region
          %s106 = sand.u32 %s18, 1
          %s107 = sand.u32 %s18, 1
          %s108 = smul.addr %s107, 32
          %s109 = scalar_lea.vmem [#allocation2], %s108
          %s110 = smul.u32 4, %s8
          %s111 = smul.addr %s110, 4
          %s112 = scalar_lea.vmem %s0, %s111
          // Predicated region
          $region25: #{_lambda_.3} parent=23 // pred_check
            _
          $region26: #{_lambda_.3} parent=23 // pred_check_branch
            %114 = sbr.rel (0) target = $region28
          $region27: #{_lambda_.3} parent=23 // pred_region
            // Predicated region
            $region29: #{_lambda_.3} parent=27 // pred_check
              _
            $region30: #{_lambda_.3} parent=27 // pred_check_branch
              %116 = sbr.rel (0) target = $region32
            $region31: #{_lambda_.3} parent=27 // pred_region
              loop: start=0, step=1, limit=1
              $region33: #{_lambda_.3} parent=31 // loop_pre_header
                _
              $region34: #{_lambda_.3} parent=31 // loop_header
                %s118 = sphi 0, %s122
                %p119 = scmp.ge.s32.totalorder %s118, 1
                %s123 = sphi %s112, %s112
                %s124 = sphi %s109, %s109
              $region35: #{_lambda_.3} parent=31 // loop_header_branch
                %121 = sbr.rel (%p119) target = $region39
              $region36: #{_lambda_.3} parent=31 // loop_body
                %v125 = vld [vmem:[%s123] sm:$0xff]
                %126 = vst [vmem:[%s124] sm:$0xff] %v125
                %v127 = vld [vmem:[%s123 + $0x8] sm:$0xff]
                %128 = vst [vmem:[%s124 + $0x8] sm:$0xff] %v127
                %v129 = vld [vmem:[%s123 + $0x20] sm:$0xff]
                %130 = vst [vmem:[%s124 + $0x10] sm:$0xff] %v129
                %v131 = vld [vmem:[%s123 + $0x28] sm:$0xff]
                %132 = vst [vmem:[%s124 + $0x18] sm:$0xff] %v131
              $region37: #{_lambda_.3} parent=31 // loop_footer
                %s122 = sadd.s32 1, %s118
              $region38: #{_lambda_.3} parent=31 // loop_footer_branch
                %117 = sbr.rel target = $region34
              $region39: #{_lambda_.3} parent=31 // loop_exit
                _
            $region32: #{_lambda_.3} parent=27 // pred_fallthru
              _
            // Predicated region
            $region40: #{_lambda_.3} parent=27 // pred_check
              _
            $region41: #{_lambda_.3} parent=27 // pred_check_branch
              %134 = sbr.rel target = $region43
            $region42: #{_lambda_.3} parent=27 // pred_region
              _
            $region43: #{_lambda_.3} parent=27 // pred_fallthru
              _
          $region28: #{_lambda_.3} parent=23 // pred_fallthru
            _
          %135 = vnop
        $region24: #{_lambda_.3} parent=19 // pred_fallthru
          _
      $region20: #{_lambda_.3} parent=5 // pred_fallthru
        _
      %p136 = scmp.le.s32.totalorder 1, %s8
      %p137 = scmp.lt.s32.totalorder %s8, 3
      %p138 = pnand %p136, %p137
      %p139 = pneg %p138
      // Predicated region
      $region44: #{_lambda_.3} parent=5 // pred_check
        _
      $region45: #{_lambda_.3} parent=5 // pred_check_branch
        %141 = sbr.rel (%p138) target = $region47
      $region46: #{_lambda_.3} parent=5 // pred_region
        %s142 = ssub.s32 %s8, 1
        %s143 = sand.u32 %s21, 1
        %s144 = sand.u32 %s21, 1
        %s145 = smul.addr %s144, 32
        %s146 = scalar_lea.vmem [#allocation2], %s145
        // Predicated region
        $region48: #{_lambda_.3} parent=46 // pred_check
          %p147 = pneg %p34
        $region49: #{_lambda_.3} parent=46 // pred_check_branch
          %149 = sbr.rel (%p147) target = $region51
        $region50: #{_lambda_.3} parent=46 // pred_region
          _
        $region51: #{_lambda_.3} parent=46 // pred_fallthru
          _
        %s150 = sand.u32 %s21, 1
        %s151 = sand.u32 %s21, 1
        %s152 = smul.addr %s151, 32
        %s153 = scalar_lea.vmem [#allocation2], %s152
        %p154 = pneg %p34
        %p155 = pneg %p31
        %p156 = pneg %p55
        %p157 = pneg %p52
        %p158 = pneg %p81
        %p159 = pneg %p78
        %s160 = sand.u32 %s68, 1
        %s161 = sand.u32 %s68, 1
        %s162 = smul.addr %s161, 64
        %s163 = scalar_lea.vmem [#allocation3], %s162
        %s164 = smul.u32 4, %s13
        %s165 = smul.u32 4, %s13
        %v166 = vld [vmem:[%s1] sm:$0xff]
        %v167 = vld [vmem:[%s1 + $0x8] sm:$0xff]
        %s168 = scalar_lea.vmem %s1, 16
        %v169 = vld [vmem:[%s168] sm:$0xff]
        %v170 = vld [vmem:[%s168 + $0x8] sm:$0xff]
        %v171 = vld [vmem:[%s146] sm:$0xff]
        %v172 = vld [vmem:[%s146 + $0x8] sm:$0xff]
        %v173 = vld [vmem:[%s146 + $0x10] sm:$0xff]
        %v174 = vld [vmem:[%s146 + $0x18] sm:$0xff]
        %v175 = vunpack.c.l.bf16 %v171
        %v176 = vunpack.c.h.bf16 %v171
        %v177 = vunpack.c.l.bf16 %v172
        %v178 = vunpack.c.h.bf16 %v172
        %v179 = vunpack.c.l.bf16 %v173
        %v180 = vunpack.c.h.bf16 %v173
        %v181 = vunpack.c.l.bf16 %v174
        %v182 = vunpack.c.h.bf16 %v174
        %184 = vset.pattern.permute.xlu0 0
        %185 = vperm.xlu0 %184, %v166
        %v186 = vpop.permute.xlu0 %185
        %189 = vset.pattern.permute.xlu0 0
        %190 = vperm.xlu0 %189, %v167
        %v191 = vpop.permute.xlu0 %190
        %v193 = vmul.f32 %v175, %v186
        %v194 = vmul.f32 %v176, %v186
        %v195 = vmul.f32 %v177, %v186
        %v196 = vmul.f32 %v178, %v186
        %v197 = vmul.f32 %v179, %v191
        %v198 = vmul.f32 %v180, %v191
        %v199 = vmul.f32 %v181, %v191
        %v200 = vmul.f32 %v182, %v191
        %202 = vset.pattern.permute.xlu0 0
        %203 = vperm.xlu0 %202, %v169
        %v204 = vpop.permute.xlu0 %203
        %207 = vset.pattern.permute.xlu0 0
        %208 = vperm.xlu0 %207, %v170
        %v209 = vpop.permute.xlu0 %208
        %v211 = vadd.f32 %v193, %v204
        %v212 = vadd.f32 %v194, %v204
        %v213 = vadd.f32 %v195, %v204
        %v214 = vadd.f32 %v196, %v204
        %v215 = vadd.f32 %v197, %v209
        %v216 = vadd.f32 %v198, %v209
        %v217 = vadd.f32 %v199, %v209
        %v218 = vadd.f32 %v200, %v209
        %v219 = vmax.f32 %v211, 0.0
        %v220 = vmax.f32 %v212, 0.0
        %v221 = vmax.f32 %v213, 0.0
        %v222 = vmax.f32 %v214, 0.0
        %v223 = vmax.f32 %v215, 0.0
        %v224 = vmax.f32 %v216, 0.0
        %v225 = vmax.f32 %v217, 0.0
        %v226 = vmax.f32 %v218, 0.0
        %227 = vst [vmem:[%s163] sm:$0xff] %v219
        %228 = vst [vmem:[%s163 + $0x8] sm:$0xff] %v220
        %229 = vst [vmem:[%s163 + $0x10] sm:$0xff] %v221
        %230 = vst [vmem:[%s163 + $0x18] sm:$0xff] %v222
        %231 = vst [vmem:[%s163 + $0x20] sm:$0xff] %v223
        %232 = vst [vmem:[%s163 + $0x28] sm:$0xff] %v224
        %233 = vst [vmem:[%s163 + $0x30] sm:$0xff] %v225
        %234 = vst [vmem:[%s163 + $0x38] sm:$0xff] %v226
        %s235 = sand.u32 %s68, 1
        %s236 = sand.u32 %s68, 1
        %s237 = smul.addr %s236, 64
        %s238 = scalar_lea.vmem [#allocation3], %s237
        // Predicated region
        $region52: #{_lambda_.3} parent=46 // pred_check
          %p239 = pneg %p78
        $region53: #{_lambda_.3} parent=46 // pred_check_branch
          %241 = sbr.rel (%p239) target = $region55
        $region54: #{_lambda_.3} parent=46 // pred_region
          %s242 = smul.u32 4, %s13
          %s243 = smul.addr %s242, 8
          %s244 = scalar_lea.vmem %s2, %s243
          // Predicated region
          $region56: #{_lambda_.3} parent=54 // pred_check
            _
          $region57: #{_lambda_.3} parent=54 // pred_check_branch
            %246 = sbr.rel (0) target = $region59
          $region58: #{_lambda_.3} parent=54 // pred_region
            // Predicated region
            $region60: #{_lambda_.3} parent=58 // pred_check
              _
            $region61: #{_lambda_.3} parent=58 // pred_check_branch
              %248 = sbr.rel (0) target = $region63
            $region62: #{_lambda_.3} parent=58 // pred_region
              loop: start=0, step=1, limit=1
              $region64: #{_lambda_.3} parent=62 // loop_pre_header
                _
              $region65: #{_lambda_.3} parent=62 // loop_header
                %s250 = sphi 0, %s254
                %p251 = scmp.ge.s32.totalorder %s250, 1
                %s255 = sphi %s238, %s238
                %s256 = sphi %s244, %s244
              $region66: #{_lambda_.3} parent=62 // loop_header_branch
                %253 = sbr.rel (%p251) target = $region70
              $region67: #{_lambda_.3} parent=62 // loop_body
                %v257 = vld [vmem:[%s255] sm:$0xff]
                %258 = vst [vmem:[%s256] sm:$0xff] %v257
                %v259 = vld [vmem:[%s255 + $0x8] sm:$0xff]
                %260 = vst [vmem:[%s256 + $0x8] sm:$0xff] %v259
                %v261 = vld [vmem:[%s255 + $0x10] sm:$0xff]
                %262 = vst [vmem:[%s256 + $0x10] sm:$0xff] %v261
                %v263 = vld [vmem:[%s255 + $0x18] sm:$0xff]
                %264 = vst [vmem:[%s256 + $0x18] sm:$0xff] %v263
                %v265 = vld [vmem:[%s255 + $0x20] sm:$0xff]
                %266 = vst [vmem:[%s256 + $0x40] sm:$0xff] %v265
                %v267 = vld [vmem:[%s255 + $0x28] sm:$0xff]
                %268 = vst [vmem:[%s256 + $0x48] sm:$0xff] %v267
                %v269 = vld [vmem:[%s255 + $0x30] sm:$0xff]
                %270 = vst [vmem:[%s256 + $0x50] sm:$0xff] %v269
                %v271 = vld [vmem:[%s255 + $0x38] sm:$0xff]
                %272 = vst [vmem:[%s256 + $0x58] sm:$0xff] %v271
              $region68: #{_lambda_.3} parent=62 // loop_footer
                %s254 = sadd.s32 1, %s250
              $region69: #{_lambda_.3} parent=62 // loop_footer_branch
                %249 = sbr.rel target = $region65
              $region70: #{_lambda_.3} parent=62 // loop_exit
                _
            $region63: #{_lambda_.3} parent=58 // pred_fallthru
              _
            // Predicated region
            $region71: #{_lambda_.3} parent=58 // pred_check
              _
            $region72: #{_lambda_.3} parent=58 // pred_check_branch
              %274 = sbr.rel target = $region74
            $region73: #{_lambda_.3} parent=58 // pred_region
              _
            $region74: #{_lambda_.3} parent=58 // pred_fallthru
              _
          $region59: #{_lambda_.3} parent=54 // pred_fallthru
            _
          %275 = vnop
        $region55: #{_lambda_.3} parent=46 // pred_fallthru
          _
      $region47: #{_lambda_.3} parent=5 // pred_fallthru
        _
      %p276 = scmp.le.s32.totalorder 2, %s8
      // Predicated region
      $region75: #{_lambda_.3} parent=5 // pred_check
        %p277 = pneg %p276
      $region76: #{_lambda_.3} parent=5 // pred_check_branch
        %279 = sbr.rel (%p277) target = $region78
      $region77: #{_lambda_.3} parent=5 // pred_region
        %s280 = ssub.s32 %s8, 2
        // Predicated region
        $region79: #{_lambda_.3} parent=77 // pred_check
          %p281 = pneg %p84
        $region80: #{_lambda_.3} parent=77 // pred_check_branch
          %283 = sbr.rel (%p281) target = $region82
        $region81: #{_lambda_.3} parent=77 // pred_region
          %s284 = sand.u32 %s69, 1
          %s285 = sand.u32 %s69, 1
          %s286 = smul.addr %s285, 64
          %s287 = scalar_lea.vmem [#allocation3], %s286
        $region82: #{_lambda_.3} parent=77 // pred_fallthru
          _
      $region78: #{_lambda_.3} parent=5 // pred_fallthru
        _
    $region6: #{_lambda_.3} parent=1 // loop_footer
      %s12 = sadd.s32 1, %s8
    $region7: #{_lambda_.3} parent=1 // loop_footer_branch
      %7 = sbr.rel target = $region3
    $region8: #{_lambda_.3} parent=1 // loop_exit
      _

</llo_original>
